<compile_context>
chip_gen: v7x
topology: tpu7x:2x2x1
jax: 0.10.0
libtpu: 0.0.40
codegen_flags: <defaults>
</compile_context>

<pallas_src>
import functools

import jax
import jax.numpy as jnp
from jax.experimental import pallas as pl
from jax.experimental.pallas import tpu as pltpu


# ---------------------------------------------------------------------------
# Kernel
# ---------------------------------------------------------------------------
def _gated_rmsnorm_kernel(*refs, eps, activation, has_residual, has_weight,
                          has_bias):
    it = iter(refs)
    x_ref = next(it)
    g_ref = next(it)
    r_ref = next(it) if has_residual else None
    w_ref = next(it) if has_weight else None
    b_ref = next(it) if has_bias else None
    o_ref = next(it)

    # f32 accumulation regardless of input dtype.
    x = x_ref[...].astype(jnp.float32)                       # (tile_rows, H)
    if r_ref is not None:
        x = x + r_ref[...].astype(jnp.float32)               # fused residual

    # RMS over the normalized (last / lane) axis; rsqrt -> EUP, no divide.
    mean_sq = jnp.mean(x * x, axis=-1, keepdims=True)
    inv_rms = jax.lax.rsqrt(mean_sq + eps)
    x_hat = x * inv_rms
    if w_ref is not None:
        x_hat = x_hat * w_ref[...]                           # (1, H) f32 scale
    if b_ref is not None:
        x_hat = x_hat + b_ref[...]                           # (1, H) f32 bias

    # Gate. sigmoid(g) = 0.5*(tanh(g/2)+1): tanh goes to the EUP slot,
    # no per-element divide on the VALU.
    g = g_ref[...].astype(jnp.float32)
    sig_g = 0.5 * (jnp.tanh(0.5 * g) + 1.0)
    if activation in ("swish", "silu"):
        gated = g * sig_g
    else:  # 'sigmoid'
        gated = sig_g

    o_ref[...] = (x_hat * gated).astype(o_ref.dtype)


# ---------------------------------------------------------------------------
# Wrapper
# ---------------------------------------------------------------------------
def _vmem_capacity_bytes():
    try:
        return int(pltpu.get_tpu_info().vmem_capacity_bytes)
    except Exception:
        return 64 << 20  # conservative default (v7x per-TC VMEM)


def _pick_block_rows(rows, H, itemsize, n_streams, stream_budget_bytes):
    """Largest row tile whose double-buffered streamed footprint fits budget."""
    # Sublane packing: 8 rows for 4-byte, 16 for 2-byte, 32 for 1-byte dtypes.
    align = max(8, 32 // max(itemsize, 1))
    per_row = n_streams * 2 * H * itemsize          # 2 = double buffering
    br = max(stream_budget_bytes // per_row, 1)
    br = min(br, 1024, rows)                        # diminishing returns > ~1K
    if rows >= align:
        br = max((br // align) * align, align)
    else:
        br = rows                                   # tiny input: one full tile
    return int(br)


def gated_rms_norm(x, g, weight=None, bias=None, residual=None, *, eps=1e-8,
                   activation="swish", block_rows=None):
    """Gated RMSNorm over the last axis.

    x, g, (residual): (..., H);  weight/bias: (H,) or None.
    Returns same shape/dtype as x.
    """
    activation = activation.lower()
    assert activation in ("swish", "silu", "sigmoid")

    orig_shape = x.shape
    H = orig_shape[-1]
    rows = 1
    for d in orig_shape[:-1]:
        rows *= int(d)

    x2 = x.reshape(rows, H)
    g2 = g.reshape(rows, H)

    has_residual = residual is not None
    has_weight = weight is not None
    has_bias = bias is not None

    inputs = [x2, g2]
    if has_residual:
        inputs.append(residual.reshape(rows, H))
    if has_weight:
        inputs.append(weight.reshape(1, H).astype(jnp.float32))
    if has_bias:
        inputs.append(bias.reshape(1, H).astype(jnp.float32))

    itemsize = jnp.dtype(x.dtype).itemsize
    # Streamed, double-buffered row arrays: x, g, (residual), out.
    n_streams = 3 + int(has_residual)

    cap = _vmem_capacity_bytes()
    stream_budget = cap // 2  # leave half of VMEM for params/compiler scratch
    if block_rows is None:
        block_rows = _pick_block_rows(rows, H, itemsize, n_streams,
                                      stream_budget)
    else:
        block_rows = int(min(block_rows, rows))
        if rows >= 8 and block_rows % 8 != 0:
            block_rows = max((block_rows // 8) * 8, 8)

    grid = (pl.cdiv(rows, block_rows),)

    # NOTE: for peak store bandwidth H should be a multiple of 128 (lane-dense
    # vst); smaller H still works but uses masked partial stores.
    row_spec = pl.BlockSpec((block_rows, H), lambda i: (i, 0))
    par_spec = pl.BlockSpec((1, H), lambda i: (0, 0))

    in_specs = [row_spec, row_spec]
    if has_residual:
        in_specs.append(row_spec)
    if has_weight:
        in_specs.append(par_spec)
    if has_bias:
        in_specs.append(par_spec)

    # Raise the scoped VMEM limit so the budgeted tiles actually compile
    # (defaults are 16/32 MiB on v5e/v6e/v7x), while staying well under the
    # physical capacity.
    needed = n_streams * 2 * block_rows * H * itemsize
    needed += (int(has_weight) + int(has_bias)) * 2 * H * 4
    vmem_limit = int(min(int(cap * 0.9), max(needed + (4 << 20), 32 << 20)))

    kernel = functools.partial(
        _gated_rmsnorm_kernel,
        eps=float(eps),
        activation=activation,
        has_residual=has_residual,
        has_weight=has_weight,
        has_bias=has_bias,
    )

    out2 = pl.pallas_call(
        kernel,
        out_shape=jax.ShapeDtypeStruct((rows, H), x.dtype),
        grid_spec=pltpu.PrefetchScalarGridSpec(
            num_scalar_prefetch=0,
            grid=grid,
            in_specs=in_specs,
            out_specs=row_spec,
        ),
        compiler_params=pltpu.CompilerParams(
            dimension_semantics=("parallel",),
            vmem_limit_bytes=vmem_limit,
        ),
    )(*inputs)

    return out2.reshape(orig_shape)


# ---------------------------------------------------------------------------
# Pure-JAX reference (mirrors the PyTorch module's forward)
# ---------------------------------------------------------------------------
def _reference(x, g, weight=None, bias=None, residual=None, eps=1e-8,
               activation="swish"):
    if residual is not None:
        x = x + residual
    rms = jnp.sqrt(jnp.mean(jnp.square(x), axis=-1, keepdims=True) + eps)
    x_hat = x / rms
    if weight is not None:
        x_hat = x_hat * weight
    if bias is not None:
        x_hat = x_hat + bias
    sig = jax.nn.sigmoid(g)
    gated = g * sig if activation in ("swish", "silu") else sig
    return x_hat * gated


if __name__ == "__main__":
    # Small, lane-dense test shape (hidden = 128 -> unmasked vector stores).
    batch, seq, hidden = 2, 8, 128
    key = jax.random.PRNGKey(0)
    kx, kg, kr = jax.random.split(key, 3)

    x = jax.random.normal(kx, (batch, seq, hidden), dtype=jnp.float32)
    g = jax.random.normal(kg, (batch, seq, hidden), dtype=jnp.float32)
    residual = jax.random.normal(kr, (batch, seq, hidden), dtype=jnp.float32)

    # Module init (use_weight=True, use_bias=False): weight = ones(H).
    weight = jnp.ones((hidden,), dtype=jnp.float32)

    # swish gate + fused residual (default module config).
    out = gated_rms_norm(x, g, weight, residual=residual,
                         eps=1e-8, activation="swish")
    out = jax.block_until_ready(out)
    ref = _reference(x, g, weight, residual=residual,
                     eps=1e-8, activation="swish")
    assert out.shape == x.shape and out.dtype == x.dtype
    assert jnp.allclose(out, ref, atol=1e-5, rtol=1e-5), \
        float(jnp.max(jnp.abs(out - ref)))

    # sigmoid gate, no residual.
    out2 = jax.block_until_ready(
        gated_rms_norm(x, g, weight, eps=1e-8, activation="sigmoid"))
    ref2 = _reference(x, g, weight, eps=1e-8, activation="sigmoid")
    assert jnp.allclose(out2, ref2, atol=1e-5, rtol=1e-5)

    print("KERNEL_OK")
</pallas_src>

<mosaic_0001>
module attributes {stable_mosaic.version = 11 : i64} {
  func.func @_gated_rmsnorm_kernel(%arg0: i32, %arg1: memref<16x128xf32, #tpu.memory_space<vmem>>, %arg2: memref<16x128xf32, #tpu.memory_space<vmem>>, %arg3: memref<16x128xf32, #tpu.memory_space<vmem>>, %arg4: memref<1x128xf32, #tpu.memory_space<vmem>>, %arg5: memref<16x128xf32, #tpu.memory_space<vmem>>) attributes {dimension_semantics = [#tpu.dimension_semantics<parallel>], iteration_bounds = array<i64: 1>, scalar_prefetch = 0 : i64, scratch_operands = 0 : i64, tpu.core_type = #tpu.core_type<tc>, window_params = [{transform_indices = @transform_0, window_bounds = array<i64: 16, 128>}, {transform_indices = @transform_1, window_bounds = array<i64: 16, 128>}, {transform_indices = @transform_2, window_bounds = array<i64: 16, 128>}, {pipeline_mode = #tpu.pipeline_mode<synchronous>, transform_indices = @transform_3, window_bounds = array<i64: 1, 128>}, {transform_indices = @transform_4, window_bounds = array<i64: 16, 128>}]} {
    %c0 = arith.constant 0 : index
    %c0_0 = arith.constant 0 : index
    %0 = vector.load %arg1[%c0, %c0_0] : memref<16x128xf32, #tpu.memory_space<vmem>>, vector<16x128xf32>
    %c0_1 = arith.constant 0 : index
    %c0_2 = arith.constant 0 : index
    %1 = vector.load %arg3[%c0_1, %c0_2] : memref<16x128xf32, #tpu.memory_space<vmem>>, vector<16x128xf32>
    %2 = arith.addf %0, %1 : vector<16x128xf32>
    %3 = arith.mulf %2, %2 : vector<16x128xf32>
    %cst = arith.constant dense<0.000000e+00> : vector<16xf32>
    %4 = vector.multi_reduction <add>, %3, %cst [1] : vector<16x128xf32> to vector<16xf32>
    %5 = vector.shape_cast %4 : vector<16xf32> to vector<16x1xf32>
    %cst_3 = arith.constant 1.280000e+02 : f32
    %6 = vector.broadcast %cst_3 : f32 to vector<16x1xf32>
    %7 = arith.divf %5, %6 : vector<16x1xf32>
    %cst_4 = arith.constant 9.99999993E-9 : f32
    %8 = vector.broadcast %cst_4 : f32 to vector<16x1xf32>
    %9 = arith.addf %7, %8 : vector<16x1xf32>
    %10 = math.rsqrt %9 : vector<16x1xf32>
    %11 = vector.broadcast %10 : vector<16x1xf32> to vector<16x128xf32>
    %12 = arith.mulf %2, %11 : vector<16x128xf32>
    %c0_5 = arith.constant 0 : index
    %c0_6 = arith.constant 0 : index
    %13 = vector.load %arg4[%c0_5, %c0_6] : memref<1x128xf32, #tpu.memory_space<vmem>>, vector<1x128xf32>
    %14 = vector.broadcast %13 : vector<1x128xf32> to vector<16x128xf32>
    %15 = arith.mulf %12, %14 : vector<16x128xf32>
    %c0_7 = arith.constant 0 : index
    %c0_8 = arith.constant 0 : index
    %16 = vector.load %arg2[%c0_7, %c0_8] : memref<16x128xf32, #tpu.memory_space<vmem>>, vector<16x128xf32>
    %cst_9 = arith.constant 5.000000e-01 : f32
    %17 = vector.broadcast %cst_9 : f32 to vector<16x128xf32>
    %18 = arith.mulf %17, %16 : vector<16x128xf32>
    %19 = math.tanh %18 : vector<16x128xf32>
    %cst_10 = arith.constant 1.000000e+00 : f32
    %20 = vector.broadcast %cst_10 : f32 to vector<16x128xf32>
    %21 = arith.addf %19, %20 : vector<16x128xf32>
    %cst_11 = arith.constant 5.000000e-01 : f32
    %22 = vector.broadcast %cst_11 : f32 to vector<16x128xf32>
    %23 = arith.mulf %22, %21 : vector<16x128xf32>
    %24 = arith.mulf %16, %23 : vector<16x128xf32>
    %25 = arith.mulf %15, %24 : vector<16x128xf32>
    %c0_12 = arith.constant 0 : index
    %c0_13 = arith.constant 0 : index
    %26 = vector.load %arg5[%c0_12, %c0_13] : memref<16x128xf32, #tpu.memory_space<vmem>>, vector<16x128xf32>
    tpu.vector_store %arg5[%c0_12, %c0_13], %25 {strides = array<i32>} : memref<16x128xf32, #tpu.memory_space<vmem>>, vector<16x128xf32>,
    return
  }
  func.func @transform_0(%arg0: i32) -> (i32, i32) {
    %c0_i32 = arith.constant 0 : i32
    %c0_i32_0 = arith.constant 0 : i32
    return %arg0, %c0_i32 : i32, i32
  }
  func.func @transform_1(%arg0: i32) -> (i32, i32) {
    %c0_i32 = arith.constant 0 : i32
    %c0_i32_0 = arith.constant 0 : i32
    return %arg0, %c0_i32 : i32, i32
  }
  func.func @transform_2(%arg0: i32) -> (i32, i32) {
    %c0_i32 = arith.constant 0 : i32
    %c0_i32_0 = arith.constant 0 : i32
    return %arg0, %c0_i32 : i32, i32
  }
  func.func @transform_3(%arg0: i32) -> (i32, i32) {
    %c0_i32 = arith.constant 0 : i32
    %c0_i32_0 = arith.constant 0 : i32
    %c0_i32_1 = arith.constant 0 : i32
    return %c0_i32, %c0_i32_0 : i32, i32
  }
  func.func @transform_4(%arg0: i32) -> (i32, i32) {
    %c0_i32 = arith.constant 0 : i32
    %c0_i32_0 = arith.constant 0 : i32
    return %arg0, %c0_i32 : i32, i32
  }
}

</mosaic_0001>

<llo_original>
// kernel: tpu_custom_call.1
$region0: #{tpu_custom_call.1}
  #allocation0 [shape = 'u32[]', space=smem, size = 0x4, offset = 0x4, fixed_abs, tag = 'smem constant byte address 0x4 - core index']
  #allocation1 [shape = 'u32[144,128]{1,0:T(1,128)}', space=vmem, size = 0x12000, scoped, tag = 'internal scratch']
  %s0 = inlined_call_operand.hbm [shape: f32[16,128], index: 0, kind: input, shape index: {}]
  %s1 = inlined_call_operand.hbm [shape: f32[16,128], index: 1, kind: input, shape index: {}]
  %s2 = inlined_call_operand.hbm [shape: f32[16,128], index: 2, kind: input, shape index: {}]
  %s3 = inlined_call_operand.vmem [shape: f32[1,128], index: 3, kind: input, shape index: {}]
  %s4 = inlined_call_operand.hbm [shape: f32[16,128], index: 4, kind: output, shape index: {}]
  %s5 = sld [smem:[#allocation0]]
  $region38: #{tpu_custom_call.1} parent=0
    _
  %s7 = ssub.s32 1, %s5
  %s8 = scalar_select 0, %s7, %s5
  $region1: #{tpu_custom_call.1} parent=0
    #allocation2 [shape = 'u8[8192]{0}', space=vmem, size = 0x2000, scoped, tag = 'input window, operand 0, single buffered']
    #allocation3 [shape = 's32[1]{0}', space=sflag, size = 0x4, scoped, tag = 'scoped memory for tpu_custom_call.1']
    #allocation4 [shape = 's32[1]{0}', space=sflag, size = 0x4, scoped, tag = 'scoped memory for tpu_custom_call.1']
    #allocation5 [shape = 'u8[8192]{0}', space=vmem, size = 0x2000, scoped, tag = 'input window, operand 1, single buffered']
    #allocation6 [shape = 's32[1]{0}', space=sflag, size = 0x4, scoped, tag = 'scoped memory for tpu_custom_call.1']
    #allocation7 [shape = 'u8[8192]{0}', space=vmem, size = 0x2000, scoped, tag = 'input window, operand 2, single buffered']
    #allocation8 [shape = 'u8[8192]{0}', space=vmem, size = 0x2000, scoped, tag = 'output window, operand 0, single buffered']
    %9 = vsyncpa [#allocation3], 0
    %10 = vsyncpa [#allocation6], 0
    %11 = vsyncpa [#allocation4], 0
    // Predicated region
    $region2: #{tpu_custom_call.1} parent=1 // pred_check
      _
    $region3: #{tpu_custom_call.1} parent=1 // pred_check_branch
      %13 = sbr.rel (0) target = $region5
    $region4: #{tpu_custom_call.1} parent=1 // pred_region
      %s15 = ssub.s32 256, 256
      %16 = vsyncadd [#allocation3], %s15
      %s17 = sshll.u32 [#allocation2], 4
      %s18 = int_to_ptr.vmem [resolvable:$true] %s17
      %23 = dma.hbm_to_vmem [thread:$0]  %s0, 256, %s18, [#allocation3], 128, 128, 8
    $region5: #{tpu_custom_call.1} parent=1 // pred_fallthru
      _
    // Predicated region
    $region6: #{tpu_custom_call.1} parent=1 // pred_check
      _
    $region7: #{tpu_custom_call.1} parent=1 // pred_check_branch
      %25 = sbr.rel (0) target = $region9
    $region8: #{tpu_custom_call.1} parent=1 // pred_region
      %s27 = ssub.s32 256, 256
      %28 = vsyncadd [#allocation6], %s27
      %s29 = sshll.u32 [#allocation5], 4
      %s30 = int_to_ptr.vmem [resolvable:$true] %s29
      %35 = dma.hbm_to_vmem [thread:$0]  %s1, 256, %s30, [#allocation6], 128, 128, 8
    $region9: #{tpu_custom_call.1} parent=1 // pred_fallthru
      _
    // Predicated region
    $region10: #{tpu_custom_call.1} parent=1 // pred_check
      _
    $region11: #{tpu_custom_call.1} parent=1 // pred_check_branch
      %37 = sbr.rel (0) target = $region13
    $region12: #{tpu_custom_call.1} parent=1 // pred_region
      %s39 = ssub.s32 256, 256
      %40 = vsyncadd [#allocation6], %s39
      %s41 = sshll.u32 [#allocation7], 4
      %s42 = int_to_ptr.vmem [resolvable:$true] %s41
      %47 = dma.hbm_to_vmem [thread:$0]  %s2, 256, %s42, [#allocation6], 128, 128, 8
    $region13: #{tpu_custom_call.1} parent=1 // pred_fallthru
      _
    // Predicated region
    $region14: #{tpu_custom_call.1} parent=1 // pred_check
      _
    $region15: #{tpu_custom_call.1} parent=1 // pred_check_branch
      %49 = sbr.rel (0) target = $region17
    $region16: #{tpu_custom_call.1} parent=1 // pred_region
      _
    $region17: #{tpu_custom_call.1} parent=1 // pred_fallthru
      _
    // Predicated region
    $region18: #{tpu_custom_call.1} parent=1 // pred_check
      _
    $region19: #{tpu_custom_call.1} parent=1 // pred_check_branch
      %51 = sbr.rel (0) target = $region21
    $region20: #{tpu_custom_call.1} parent=1 // pred_region
      %52 = dma.done [#allocation3], 256
    $region21: #{tpu_custom_call.1} parent=1 // pred_fallthru
      _
    // Predicated region
    $region22: #{tpu_custom_call.1} parent=1 // pred_check
      _
    $region23: #{tpu_custom_call.1} parent=1 // pred_check_branch
      %54 = sbr.rel (0) target = $region25
    $region24: #{tpu_custom_call.1} parent=1 // pred_region
      %55 = dma.done [#allocation6], 256
    $region25: #{tpu_custom_call.1} parent=1 // pred_fallthru
      _
    // Predicated region
    $region26: #{tpu_custom_call.1} parent=1 // pred_check
      _
    $region27: #{tpu_custom_call.1} parent=1 // pred_check_branch
      %57 = sbr.rel (0) target = $region29
    $region28: #{tpu_custom_call.1} parent=1 // pred_region
      %58 = dma.done [#allocation6], 256
    $region29: #{tpu_custom_call.1} parent=1 // pred_fallthru
      _
    %v59 = vld [vmem:[#allocation2] sm:$0xff]
    %v60 = vld [vmem:[#allocation2 + $0x8] sm:$0xff]
    %v61 = vld [vmem:[#allocation7] sm:$0xff]
    %v62 = vld [vmem:[#allocation7 + $0x8] sm:$0xff]
    %v63 = vadd.f32 %v59, %v61
    %v64 = vadd.f32 %v60, %v62
    %v65 = vmul.f32 %v63, %v63
    %v66 = vmul.f32 %v64, %v64
    %67 = vadd.xlane.f32.xlu0 %v65
    %v68 = vpop.xlane.xlu0 %67
    %69 = vadd.xlane.f32.xlu0 %v66
    %v70 = vpop.xlane.xlu0 %69
    %v71 = vrcp.pop 128.0
    %v72 = vmul.f32 %v68, %v71
    %v73 = vmul.f32 %v70, %v71
    %v74 = vadd.f32 %v72, 1e-08
    %v75 = vadd.f32 %v73, 1e-08
    %v76 = vrsqrt.pop %v74
    %v77 = vrsqrt.pop %v75
    %v78 = vmul.f32 %v63, %v76
    %v79 = vmul.f32 %v64, %v77
    %v80 = vld [vmem:[%s3] sm:$0x1]
    %v82 = vlaneseq
    %v83 = vshrl.u32 %v82, 7
    %v84 = vsub.s32 0, %v83
    %v85 = vrot.slane %v80, %v84
    %v87 = vmul.f32 %v78, %v85
    %v88 = vmul.f32 %v79, %v85
    %v89 = vld [vmem:[#allocation5] sm:$0xff]
    %v90 = vld [vmem:[#allocation5 + $0x8] sm:$0xff]
    %v91 = vmul.f32 %v89, 0.5
    %v92 = vmul.f32 %v90, 0.5
    %v93 = vtanh.pop %v91
    %v94 = vtanh.pop %v92
    %v95 = vadd.f32 %v93, 1.0
    %v96 = vadd.f32 %v94, 1.0
    %v97 = vmul.f32 %v95, 0.5
    %v98 = vmul.f32 %v96, 0.5
    %v99 = vmul.f32 %v89, %v97
    %v100 = vmul.f32 %v90, %v98
    %v101 = vmul.f32 %v87, %v99
    %v102 = vmul.f32 %v88, %v100
    %103 = vst [vmem:[#allocation8] sm:$0xff] %v101
    %104 = vst [vmem:[#allocation8 + $0x8] sm:$0xff] %v102
    // Predicated region
    $region30: #{tpu_custom_call.1} parent=1 // pred_check
      _
    $region31: #{tpu_custom_call.1} parent=1 // pred_check_branch
      %106 = sbr.rel (0) target = $region33
    $region32: #{tpu_custom_call.1} parent=1 // pred_region
      %s108 = ssub.s32 256, 256
      %109 = vsyncadd [#allocation4], %s108
      %s110 = sshll.u32 [#allocation8], 4
      %s111 = int_to_ptr.vmem [resolvable:$true] %s110
      %116 = dma.vmem_to_hbm [thread:$0]  %s111, 256, %s4, [#allocation4], 128, 128, 8
    $region33: #{tpu_custom_call.1} parent=1 // pred_fallthru
      _
    // Predicated region
    $region34: #{tpu_custom_call.1} parent=1 // pred_check
      _
    $region35: #{tpu_custom_call.1} parent=1 // pred_check_branch
      %118 = sbr.rel (0) target = $region37
    $region36: #{tpu_custom_call.1} parent=1 // pred_region
      %119 = dma.done [#allocation4], 256
    $region37: #{tpu_custom_call.1} parent=1 // pred_fallthru
      _
    %120 = vsyncpa [#allocation3], 1
    %121 = vsyncpa [#allocation6], 1
    %122 = vsyncpa [#allocation4], 1

</llo_original>
